<compile_context>
chip_gen: v7x
topology: tpu7x:2x2x1
jax: 0.10.0
libtpu: 0.0.40
codegen_flags: <defaults>
</compile_context>

<pallas_src>
import math
import jax
import jax.numpy as jnp
from jax import lax
from jax.experimental import pallas as pl
from jax.experimental.pallas import tpu as pltpu


_VMEM = pltpu.MemorySpace.VMEM
_SMEM = pltpu.MemorySpace.SMEM
_LOG2E = 1.4426950408889634


# ---------------------------------------------------------------------------
# Kernels
# ---------------------------------------------------------------------------

def _bio_to_quantum_kernel(x_ref, w1_ref, b1_ref,
                           w2re_ref, b2re_ref, w2im_ref, b2im_ref,
                           qre_ref, qim_ref):
    # x: (B, bio_dim)
    x = x_ref[...]
    h = jnp.dot(x, w1_ref[...], preferred_element_type=jnp.float32) + b1_ref[...]
    h = jnp.maximum(h, 0.0)                                        # ReLU
    # Pre-split output projection: two lane-dense dots, no mid-vreg slicing.
    re = jnp.dot(h, w2re_ref[...], preferred_element_type=jnp.float32) + b2re_ref[...]
    im = jnp.dot(h, w2im_ref[...], preferred_element_type=jnp.float32) + b2im_ref[...]
    # F.normalize(p=2, dim=-1, eps=1e-12) on the complex vector:
    #   denom = max(||z||, 1e-12)  ->  rsqrt(max(sum|z|^2, 1e-24))
    ss = jnp.sum(re * re + im * im, axis=-1, keepdims=True)
    inv = lax.rsqrt(jnp.maximum(ss, 1e-24))                        # EUP rsqrt
    qre_ref[...] = re * inv
    qim_ref[...] = im * inv


def _quantum_to_bio_kernel(qre_ref, qim_ref, w1t_ref, b1c_ref, w2_ref, b2_ref,
                           bio_ref, unc_ref):
    # qre/qim: (1, Q) rows (the PyTorch path requires a 1-D quantum state).
    re = qre_ref[...]
    im = qim_ref[...]
    quantum_dim = re.shape[1]

    re2 = re * re
    im2 = im * im
    meas = re2 + im2                                               # |q|^2, (1, Q)

    # Analytic eigenvalue of the rank-1 outer product q q^T (no conjugate):
    # lambda = Re(sum_i q_i^2) = sum(re^2 - im^2); all other eigenvalues are 0
    # and are removed by the > 1e-10 threshold in the reference code.
    lam = jnp.sum(re2 - im2)
    lam_safe = jnp.maximum(lam, 1e-10)      # keep the untaken branch NaN-free
    entropy = jnp.where(lam > 1e-10, -lam_safe * jnp.log(lam_safe) * _LOG2E, 0.0)
    unc_ref[0] = entropy / math.log2(quantum_dim)

    # Both Linears have M=1 -> MXU would waste 7/8 sublanes.  Do them on the
    # VPU as broadcast-multiply + reduce (weights pre-laid-out, no transposes):
    #   h_col[j] = sum_q meas[q] * w1t[j, q]       (lane reduce, XLU)
    h_col = jnp.sum(meas * w1t_ref[...], axis=-1, keepdims=True) + b1c_ref[...]  # (H, 1)
    h_col = jnp.maximum(h_col, 0.0)                                # ReLU
    #   bio[k]  = sum_j h_col[j] * w2[j, k]        (sublane reduce)
    bio_ref[...] = jnp.sum(h_col * w2_ref[...], axis=0, keepdims=True) + b2_ref[...]


# ---------------------------------------------------------------------------
# Wrappers (no grid: single invocation, full arrays resident in VMEM)
# ---------------------------------------------------------------------------

def bio_to_quantum_state(bio_state, params):
    """bio_state: (B, bio_dim) f32 -> (quantum_state complex64 (B, Q), 0.0)."""
    w1, b1 = params["bq_w1"], params["bq_b1"]
    w2re, b2re = params["bq_w2_re"], params["bq_b2_re"]
    w2im, b2im = params["bq_w2_im"], params["bq_b2_im"]
    B = bio_state.shape[0]
    Q = w2re.shape[1]
    qre, qim = pl.pallas_call(
        _bio_to_quantum_kernel,
        in_specs=[pl.BlockSpec(memory_space=_VMEM)] * 7,
        out_specs=[pl.BlockSpec(memory_space=_VMEM)] * 2,
        out_shape=[jax.ShapeDtypeStruct((B, Q), jnp.float32),
                   jax.ShapeDtypeStruct((B, Q), jnp.float32)],
    )(bio_state, w1, b1, w2re, b2re, w2im, b2im)
    quantum_state = lax.complex(qre, qim)
    return quantum_state, 0.0


def quantum_to_bio_state(quantum_state, params):
    """quantum_state: (Q,) complex64 -> (bio_state (1, bio_dim) f32, uncertainty)."""
    w1t, b1c, w2, b2 = (params["qb_w1t"], params["qb_b1_col"],
                        params["qb_w2"], params["qb_b2"])
    Q = w1t.shape[1]
    bio_dim = w2.shape[1]
    # Pass re/im as (1, Q) rows; weights are pre-transposed so the kernel does
    # the M=1 Linears on the VPU with no in-kernel transpose.
    qre = jnp.real(quantum_state).reshape(1, Q).astype(jnp.float32)
    qim = jnp.imag(quantum_state).reshape(1, Q).astype(jnp.float32)
    bio, unc = pl.pallas_call(
        _quantum_to_bio_kernel,
        in_specs=[pl.BlockSpec(memory_space=_VMEM)] * 6,
        out_specs=[pl.BlockSpec(memory_space=_VMEM),
                   pl.BlockSpec(memory_space=_SMEM)],
        out_shape=[jax.ShapeDtypeStruct((1, bio_dim), jnp.float32),
                   jax.ShapeDtypeStruct((1,), jnp.float32)],
    )(qre, qim, w1t, b1c, w2, b2)
    return bio, unc[0]


def bio_entropic_bridge_forward(params, bio_state=None, quantum_state=None):
    if bio_state is not None:
        return bio_to_quantum_state(bio_state, params)
    elif quantum_state is not None:
        return quantum_to_bio_state(quantum_state, params)
    else:
        raise ValueError("Either bio_state or quantum_state must be provided")


# ---------------------------------------------------------------------------
# Deterministic parameter init (PyTorch nn.Linear default: U(-1/sqrt(in), +)).
# The bio->quantum output Linear is generated as (hidden, 2Q) and split into
# real/imag halves; the quantum->bio first Linear is stored transposed (H, Q)
# with an (H, 1) bias column so the kernel needs no transposes.
# ---------------------------------------------------------------------------

def init_params(key, bio_dim, quantum_dim, hidden_dim):
    ks = jax.random.split(key, 8)

    def lin(kw, kb, fan_in, fan_out):
        bound = 1.0 / math.sqrt(fan_in)
        w = jax.random.uniform(kw, (fan_in, fan_out), jnp.float32, -bound, bound)
        b = jax.random.uniform(kb, (1, fan_out), jnp.float32, -bound, bound)
        return w, b

    bq_w1, bq_b1 = lin(ks[0], ks[1], bio_dim, hidden_dim)          # bio -> hidden
    bq_w2, bq_b2 = lin(ks[2], ks[3], hidden_dim, quantum_dim * 2)  # hidden -> 2Q
    qb_w1, qb_b1 = lin(ks[4], ks[5], quantum_dim, hidden_dim)      # Q -> hidden
    qb_w2, qb_b2 = lin(ks[6], ks[7], hidden_dim, bio_dim)          # hidden -> bio
    return dict(
        bq_w1=bq_w1, bq_b1=bq_b1,
        bq_w2_re=bq_w2[:, :quantum_dim], bq_b2_re=bq_b2[:, :quantum_dim],
        bq_w2_im=bq_w2[:, quantum_dim:], bq_b2_im=bq_b2[:, quantum_dim:],
        qb_w1t=qb_w1.T, qb_b1_col=qb_b1.T, qb_w2=qb_w2, qb_b2=qb_b2,
    )


# ---------------------------------------------------------------------------
# Pure-JAX reference (mirrors the PyTorch module) for correctness checking
# ---------------------------------------------------------------------------

def _ref_bio_to_quantum(bio_state, params):
    h = jnp.maximum(bio_state @ params["bq_w1"] + params["bq_b1"], 0.0)
    re = h @ params["bq_w2_re"] + params["bq_b2_re"]
    im = h @ params["bq_w2_im"] + params["bq_b2_im"]
    norm = jnp.sqrt(jnp.sum(re * re + im * im, axis=-1, keepdims=True))
    denom = jnp.maximum(norm, 1e-12)
    return lax.complex(re / denom, im / denom)


def _ref_quantum_to_bio(q, params, quantum_dim):
    re, im = jnp.real(q), jnp.imag(q)
    meas = (re * re + im * im).reshape(1, -1)
    lam = jnp.sum(re * re - im * im)
    entropy = jnp.where(lam > 1e-10, -lam * jnp.log2(jnp.maximum(lam, 1e-10)), 0.0)
    unc = entropy / math.log2(quantum_dim)
    h = jnp.maximum(meas @ params["qb_w1t"].T + params["qb_b1_col"].T, 0.0)
    bio = h @ params["qb_w2"] + params["qb_b2"]
    return bio, unc


# ---------------------------------------------------------------------------

if __name__ == "__main__":
    bio_dim, quantum_dim, hidden_dim, batch = 16, 8, 32, 2

    key = jax.random.PRNGKey(0)
    kp, kx, kq = jax.random.split(key, 3)
    params = init_params(kp, bio_dim, quantum_dim, hidden_dim)

    # Path 1: bio -> quantum
    bio_state = jax.random.normal(kx, (batch, bio_dim), jnp.float32)
    quantum_out, unc0 = bio_entropic_bridge_forward(params, bio_state=bio_state)
    quantum_out = jax.block_until_ready(quantum_out)
    assert quantum_out.shape == (batch, quantum_dim)
    assert quantum_out.dtype == jnp.complex64
    assert unc0 == 0.0
    q_ref = _ref_bio_to_quantum(bio_state, params)
    assert jnp.allclose(quantum_out, q_ref, atol=1e-5, rtol=1e-5)

    # Path 2: quantum -> bio (1-D quantum state, as required by torch.outer)
    kr, ki = jax.random.split(kq)
    q_re = jax.random.normal(kr, (quantum_dim,), jnp.float32)
    q_im = jax.random.normal(ki, (quantum_dim,), jnp.float32)
    q = lax.complex(q_re, q_im)
    q = q / jnp.sqrt(jnp.sum(jnp.abs(q) ** 2))
    bio_out, uncertainty = bio_entropic_bridge_forward(params, quantum_state=q)
    bio_out = jax.block_until_ready(bio_out)
    uncertainty = jax.block_until_ready(uncertainty)
    assert bio_out.shape == (1, bio_dim)
    bio_ref, unc_ref_val = _ref_quantum_to_bio(q, params, quantum_dim)
    assert jnp.allclose(bio_out, bio_ref, atol=1e-5, rtol=1e-5)
    assert jnp.allclose(uncertainty, unc_ref_val, atol=1e-5, rtol=1e-5)

    print("KERNEL_OK")
</pallas_src>

<mosaic_0001>
module attributes {stable_mosaic.version = 11 : i64} {
  func.func @_bio_to_quantum_kernel(%arg0: memref<2x16xf32, #tpu.memory_space<vmem>>, %arg1: memref<16x32xf32, #tpu.memory_space<vmem>>, %arg2: memref<1x32xf32, #tpu.memory_space<vmem>>, %arg3: memref<32x8xf32, #tpu.memory_space<vmem>>, %arg4: memref<1x8xf32, #tpu.memory_space<vmem>>, %arg5: memref<32x8xf32, #tpu.memory_space<vmem>>, %arg6: memref<1x8xf32, #tpu.memory_space<vmem>>, %arg7: memref<2x8xf32, #tpu.memory_space<vmem>>, %arg8: memref<2x8xf32, #tpu.memory_space<vmem>>) attributes {dimension_semantics = [], scalar_prefetch = 0 : i64, scratch_operands = 0 : i64, tpu.core_type = #tpu.core_type<tc>} {
    %c0 = arith.constant 0 : index
    %c0_0 = arith.constant 0 : index
    %0 = vector.load %arg0[%c0, %c0_0] : memref<2x16xf32, #tpu.memory_space<vmem>>, vector<2x16xf32>
    %c0_1 = arith.constant 0 : index
    %c0_2 = arith.constant 0 : index
    %1 = vector.load %arg1[%c0_1, %c0_2] : memref<16x32xf32, #tpu.memory_space<vmem>>, vector<16x32xf32>
    %cst = arith.constant dense<0.000000e+00> : vector<2x32xf32>
    %2 = tpu.matmul %0, %1, %cst {dimension_numbers = #tpu.dot_dimension_numbers<[1], [0], [0], [1], [0, 0, 1, 1], [], []>} : vector<2x16xf32>, vector<16x32xf32>, vector<2x32xf32> -> vector<2x32xf32>
    %c0_3 = arith.constant 0 : index
    %c0_4 = arith.constant 0 : index
    %3 = vector.load %arg2[%c0_3, %c0_4] : memref<1x32xf32, #tpu.memory_space<vmem>>, vector<1x32xf32>
    %4 = vector.broadcast %3 : vector<1x32xf32> to vector<2x32xf32>
    %5 = arith.addf %2, %4 : vector<2x32xf32>
    %cst_5 = arith.constant 0.000000e+00 : f32
    %6 = vector.broadcast %cst_5 : f32 to vector<2x32xf32>
    %7 = arith.maximumf %5, %6 : vector<2x32xf32>
    %c0_6 = arith.constant 0 : index
    %c0_7 = arith.constant 0 : index
    %8 = vector.load %arg3[%c0_6, %c0_7] : memref<32x8xf32, #tpu.memory_space<vmem>>, vector<32x8xf32>
    %cst_8 = arith.constant dense<0.000000e+00> : vector<2x8xf32>
    %9 = tpu.matmul %7, %8, %cst_8 {dimension_numbers = #tpu.dot_dimension_numbers<[1], [0], [0], [1], [0, 0, 1, 1], [], []>} : vector<2x32xf32>, vector<32x8xf32>, vector<2x8xf32> -> vector<2x8xf32>
    %c0_9 = arith.constant 0 : index
    %c0_10 = arith.constant 0 : index
    %10 = vector.load %arg4[%c0_9, %c0_10] : memref<1x8xf32, #tpu.memory_space<vmem>>, vector<1x8xf32>
    %11 = vector.broadcast %10 : vector<1x8xf32> to vector<2x8xf32>
    %12 = arith.addf %9, %11 : vector<2x8xf32>
    %c0_11 = arith.constant 0 : index
    %c0_12 = arith.constant 0 : index
    %13 = vector.load %arg5[%c0_11, %c0_12] : memref<32x8xf32, #tpu.memory_space<vmem>>, vector<32x8xf32>
    %cst_13 = arith.constant dense<0.000000e+00> : vector<2x8xf32>
    %14 = tpu.matmul %7, %13, %cst_13 {dimension_numbers = #tpu.dot_dimension_numbers<[1], [0], [0], [1], [0, 0, 1, 1], [], []>} : vector<2x32xf32>, vector<32x8xf32>, vector<2x8xf32> -> vector<2x8xf32>
    %c0_14 = arith.constant 0 : index
    %c0_15 = arith.constant 0 : index
    %15 = vector.load %arg6[%c0_14, %c0_15] : memref<1x8xf32, #tpu.memory_space<vmem>>, vector<1x8xf32>
    %16 = vector.broadcast %15 : vector<1x8xf32> to vector<2x8xf32>
    %17 = arith.addf %14, %16 : vector<2x8xf32>
    %18 = arith.mulf %12, %12 : vector<2x8xf32>
    %19 = arith.mulf %17, %17 : vector<2x8xf32>
    %20 = arith.addf %18, %19 : vector<2x8xf32>
    %cst_16 = arith.constant dense<0.000000e+00> : vector<2xf32>
    %21 = vector.multi_reduction <add>, %20, %cst_16 [1] : vector<2x8xf32> to vector<2xf32>
    %22 = vector.shape_cast %21 : vector<2xf32> to vector<2x1xf32>
    %cst_17 = arith.constant 1.000000e-24 : f32
    %23 = vector.broadcast %cst_17 : f32 to vector<2x1xf32>
    %24 = arith.maximumf %22, %23 : vector<2x1xf32>
    %25 = math.rsqrt %24 : vector<2x1xf32>
    %26 = vector.broadcast %25 : vector<2x1xf32> to vector<2x8xf32>
    %27 = arith.mulf %12, %26 : vector<2x8xf32>
    %c0_18 = arith.constant 0 : index
    %c0_19 = arith.constant 0 : index
    %28 = vector.load %arg7[%c0_18, %c0_19] : memref<2x8xf32, #tpu.memory_space<vmem>>, vector<2x8xf32>
    tpu.vector_store %arg7[%c0_18, %c0_19], %27 {strides = array<i32>} : memref<2x8xf32, #tpu.memory_space<vmem>>, vector<2x8xf32>,
    %29 = vector.broadcast %25 : vector<2x1xf32> to vector<2x8xf32>
    %30 = arith.mulf %17, %29 : vector<2x8xf32>
    %c0_20 = arith.constant 0 : index
    %c0_21 = arith.constant 0 : index
    %31 = vector.load %arg8[%c0_20, %c0_21] : memref<2x8xf32, #tpu.memory_space<vmem>>, vector<2x8xf32>
    tpu.vector_store %arg8[%c0_20, %c0_21], %30 {strides = array<i32>} : memref<2x8xf32, #tpu.memory_space<vmem>>, vector<2x8xf32>,
    return
  }
}

</mosaic_0001>

<llo_original>
// kernel: tpu_custom_call.1
$region0: #{tpu_custom_call.1}
  #allocation0 [shape = 'u32[]', space=smem, size = 0x4, offset = 0x4, fixed_abs, tag = 'smem constant byte address 0x4 - core index']
  #allocation1 [shape = 'u32[144,128]{1,0:T(1,128)}', space=vmem, size = 0x12000, scoped, tag = 'internal scratch']
  %s0 = inlined_call_operand.vmem [shape: f32[2,16], index: 0, kind: input, shape index: {}]
  %s1 = inlined_call_operand.vmem [shape: f32[16,32], index: 1, kind: input, shape index: {}]
  %s2 = inlined_call_operand.vmem [shape: f32[1,32], index: 2, kind: input, shape index: {}]
  %s3 = inlined_call_operand.vmem [shape: f32[32,8], index: 3, kind: input, shape index: {}]
  %s4 = inlined_call_operand.vmem [shape: f32[1,8], index: 4, kind: input, shape index: {}]
  %s5 = inlined_call_operand.vmem [shape: f32[32,8], index: 5, kind: input, shape index: {}]
  %s6 = inlined_call_operand.vmem [shape: f32[1,8], index: 6, kind: input, shape index: {}]
  %s7 = inlined_call_operand.hbm [shape: f32[2,8], index: 7, kind: output, shape index: {0}]
  %s8 = inlined_call_operand.hbm [shape: f32[2,8], index: 8, kind: output, shape index: {1}]
  %9 = xla_tuple %s7, %s8
  %s10 = sld [smem:[#allocation0]]
  $region46: #{tpu_custom_call.1} parent=0
    _
  %s12 = ssub.s32 1, %s10
  %s13 = scalar_select 0, %s12, %s10
  $region1: #{tpu_custom_call.1} parent=0
    #allocation2 [shape = 'u8[1024]{0}', space=vmem, size = 0x400, scoped, tag = 'output window, operand 0, single buffered']
    #allocation3 [shape = 's32[1]{0}', space=sflag, size = 0x4, scoped, tag = 'scoped memory for tpu_custom_call.1']
    #allocation4 [shape = 'u8[1024]{0}', space=vmem, size = 0x400, scoped, tag = 'output window, operand 1, single buffered']
    #allocation5 [shape = 's32[1]{0}', space=sflag, size = 0x4, scoped, tag = 'scoped memory for tpu_custom_call.1']
    %14 = vsyncpa [#allocation3], 0
    %15 = vsyncpa [#allocation5], 0
    // Predicated region
    $region2: #{tpu_custom_call.1} parent=1 // pred_check
      _
    $region3: #{tpu_custom_call.1} parent=1 // pred_check_branch
      %17 = sbr.rel (0) target = $region5
    $region4: #{tpu_custom_call.1} parent=1 // pred_region
      _
    $region5: #{tpu_custom_call.1} parent=1 // pred_fallthru
      _
    // Predicated region
    $region6: #{tpu_custom_call.1} parent=1 // pred_check
      _
    $region7: #{tpu_custom_call.1} parent=1 // pred_check_branch
      %19 = sbr.rel (0) target = $region9
    $region8: #{tpu_custom_call.1} parent=1 // pred_region
      _
    $region9: #{tpu_custom_call.1} parent=1 // pred_fallthru
      _
    // Predicated region
    $region10: #{tpu_custom_call.1} parent=1 // pred_check
      _
    $region11: #{tpu_custom_call.1} parent=1 // pred_check_branch
      %21 = sbr.rel (0) target = $region13
    $region12: #{tpu_custom_call.1} parent=1 // pred_region
      _
    $region13: #{tpu_custom_call.1} parent=1 // pred_fallthru
      _
    // Predicated region
    $region14: #{tpu_custom_call.1} parent=1 // pred_check
      _
    $region15: #{tpu_custom_call.1} parent=1 // pred_check_branch
      %23 = sbr.rel (0) target = $region17
    $region16: #{tpu_custom_call.1} parent=1 // pred_region
      _
    $region17: #{tpu_custom_call.1} parent=1 // pred_fallthru
      _
    // Predicated region
    $region18: #{tpu_custom_call.1} parent=1 // pred_check
      _
    $region19: #{tpu_custom_call.1} parent=1 // pred_check_branch
      %25 = sbr.rel (0) target = $region21
    $region20: #{tpu_custom_call.1} parent=1 // pred_region
      _
    $region21: #{tpu_custom_call.1} parent=1 // pred_fallthru
      _
    // Predicated region
    $region22: #{tpu_custom_call.1} parent=1 // pred_check
      _
    $region23: #{tpu_custom_call.1} parent=1 // pred_check_branch
      %27 = sbr.rel (0) target = $region25
    $region24: #{tpu_custom_call.1} parent=1 // pred_region
      _
    $region25: #{tpu_custom_call.1} parent=1 // pred_fallthru
      _
    // Predicated region
    $region26: #{tpu_custom_call.1} parent=1 // pred_check
      _
    $region27: #{tpu_custom_call.1} parent=1 // pred_check_branch
      %29 = sbr.rel (0) target = $region29
    $region28: #{tpu_custom_call.1} parent=1 // pred_region
      _
    $region29: #{tpu_custom_call.1} parent=1 // pred_fallthru
      _
    %v30 = vld [vmem:[%s0] sm:$0x3]
    %v31 = vld [vmem:[%s1] sm:$0xff]
    %v32 = vld [vmem:[%s1 + $0x8] sm:$0xff]
    %v33 = vld [vmem:[%s2] sm:$0x1]
    %v35 = vlaneseq
    %v36 = vshrl.u32 %v35, 7
    %v37 = vsub.s32 0, %v36
    %v38 = vrot.slane %v33, %v37
    %vm40 = vcmask 130048
    %v42 = vsel %vm40, %v30, 0
    %44 = vmatprep.subr.mxu0 0.0
    %45 = vmatpush1.msra.mxu0 %v31
    %46 = vmatprep.subr.mxu0 0.0
    %47 = vmatpush1.msra.mxu0 %v32
    %48 = vmatprep.subr.mxu0 0.0
    %49 = vmatpush1.msra.mxu0 0.0
    %50 = vmatprep.subr.mxu0 0.0
    %51 = vmatpush1.msra.mxu0 0.0
    %52 = vmatprep.subr.mxu0 0.0
    %53 = vmatpush1.msra.mxu0 0.0
    %54 = vmatprep.subr.mxu0 0.0
    %55 = vmatpush1.msra.mxu0 0.0
    %56 = vmatprep.subr.mxu0 0.0
    %57 = vmatpush1.msra.mxu0 0.0
    %58 = vmatprep.subr.mxu0 0.0
    %59 = vmatpush1.msra.mxu0 0.0
    %60 = vmatprep.subr.mxu0 0.0
    %61 = vmatpush1.msra.mxu0 0.0
    %62 = vmatprep.subr.mxu0 0.0
    %63 = vmatpush1.msra.mxu0 0.0
    %64 = vmatprep.subr.mxu0 0.0
    %65 = vmatpush1.msra.mxu0 0.0
    %66 = vmatprep.subr.mxu0 0.0
    %67 = vmatpush1.msra.mxu0 0.0
    %68 = vmatprep.subr.mxu0 0.0
    %69 = vmatpush1.msra.mxu0 0.0
    %70 = vmatprep.subr.mxu0 0.0
    %71 = vmatpush1.msra.mxu0 0.0
    %72 = vmatprep.subr.mxu0 0.0
    %73 = vmatpush1.msra.mxu0 0.0
    %74 = vmatprep.subr.mxu0 0.0
    %75 = vmatpush1.msra.mxu0 0.0
    %76 = vmatprep.subr.mxu0 0.0
    %77 = vmatpush1.msra.mxu0 0.0
    %78 = vmatprep.subr.mxu0 0.0
    %79 = vmatpush1.msra.mxu0 0.0
    %80 = vmatprep.subr.mxu0 0.0
    %81 = vmatpush1.msra.mxu0 0.0
    %82 = vmatprep.subr.mxu0 0.0
    %83 = vmatpush1.msra.mxu0 0.0
    %84 = vmatprep.subr.mxu0 0.0
    %85 = vmatpush1.msra.mxu0 0.0
    %86 = vmatprep.subr.mxu0 0.0
    %87 = vmatpush1.msra.mxu0 0.0
    %88 = vmatprep.subr.mxu0 0.0
    %89 = vmatpush1.msra.mxu0 0.0
    %90 = vmatprep.subr.mxu0 0.0
    %91 = vmatpush1.msra.mxu0 0.0
    %92 = vmatprep.subr.mxu0 0.0
    %93 = vmatpush1.msra.mxu0 0.0
    %94 = vmatprep.subr.mxu0 0.0
    %95 = vmatpush1.msra.mxu0 0.0
    %96 = vmatprep.subr.mxu0 0.0
    %97 = vmatpush1.msra.mxu0 0.0
    %98 = vmatprep.subr.mxu0 0.0
    %99 = vmatpush1.msra.mxu0 0.0
    %100 = vmatprep.subr.mxu0 0.0
    %101 = vmatpush1.msra.mxu0 0.0
    %102 = vmatprep.subr.mxu0 0.0
    %103 = vmatpush1.msra.mxu0 0.0
    %104 = vmatprep.subr.mxu0 0.0
    %105 = vmatpush1.msra.mxu0 0.0
    %106 = vmatprep.subr.mxu0 0.0
    %107 = vmatpush1.msra.mxu0 0.0
    %108 = vmatprep.mubr.f32.mxu0 0.0
    %109 = vmatmul.mubr.f32.gmra.mrb[0].mxu0 %v42
    %v110 = vpop.f32.mrb[0].mxu0
    %v111 = vadd.f32 %v38, %v110
    %v112 = vpop.f32.mrb[0].mxu0
    %113 = vdwg.mxu0
    %v114 = vmax.f32 %v111, 0.0
    %v115 = vld [vmem:[%s3] sm:$0xff]
    %v116 = vld [vmem:[%s3 + $0x8] sm:$0xff]
    %v117 = vld [vmem:[%s3 + $0x10] sm:$0xff]
    %v118 = vld [vmem:[%s3 + $0x18] sm:$0xff]
    %v119 = vld [vmem:[%s4] sm:$0x1]
    %v121 = vlaneseq
    %v122 = vshrl.u32 %v121, 7
    %v123 = vsub.s32 0, %v122
    %v124 = vrot.slane %v119, %v123
    %vm126 = vcmask 261120
    %v128 = vsel %vm126, %v114, 0
    %130 = vmatprep.subr.mxu0 0.0
    %131 = vmatpush1.msra.mxu0 %v115
    %132 = vmatprep.subr.mxu0 0.0
    %133 = vmatpush1.msra.mxu0 %v116
    %134 = vmatprep.subr.mxu0 0.0
    %135 = vmatpush1.msra.mxu0 %v117
    %136 = vmatprep.subr.mxu0 0.0
    %137 = vmatpush1.msra.mxu0 %v118
    %138 = vmatprep.subr.mxu0 0.0
    %139 = vmatpush1.msra.mxu0 0.0
    %140 = vmatprep.subr.mxu0 0.0
    %141 = vmatpush1.msra.mxu0 0.0
    %142 = vmatprep.subr.mxu0 0.0
    %143 = vmatpush1.msra.mxu0 0.0
    %144 = vmatprep.subr.mxu0 0.0
    %145 = vmatpush1.msra.mxu0 0.0
    %146 = vmatprep.subr.mxu0 0.0
    %147 = vmatpush1.msra.mxu0 0.0
    %148 = vmatprep.subr.mxu0 0.0
    %149 = vmatpush1.msra.mxu0 0.0
    %150 = vmatprep.subr.mxu0 0.0
    %151 = vmatpush1.msra.mxu0 0.0
    %152 = vmatprep.subr.mxu0 0.0
    %153 = vmatpush1.msra.mxu0 0.0
    %154 = vmatprep.subr.mxu0 0.0
    %155 = vmatpush1.msra.mxu0 0.0
    %156 = vmatprep.subr.mxu0 0.0
    %157 = vmatpush1.msra.mxu0 0.0
    %158 = vmatprep.subr.mxu0 0.0
    %159 = vmatpush1.msra.mxu0 0.0
    %160 = vmatprep.subr.mxu0 0.0
    %161 = vmatpush1.msra.mxu0 0.0
    %162 = vmatprep.subr.mxu0 0.0
    %163 = vmatpush1.msra.mxu0 0.0
    %164 = vmatprep.subr.mxu0 0.0
    %165 = vmatpush1.msra.mxu0 0.0
    %166 = vmatprep.subr.mxu0 0.0
    %167 = vmatpush1.msra.mxu0 0.0
    %168 = vmatprep.subr.mxu0 0.0
    %169 = vmatpush1.msra.mxu0 0.0
    %170 = vmatprep.subr.mxu0 0.0
    %171 = vmatpush1.msra.mxu0 0.0
    %172 = vmatprep.subr.mxu0 0.0
    %173 = vmatpush1.msra.mxu0 0.0
    %174 = vmatprep.subr.mxu0 0.0
    %175 = vmatpush1.msra.mxu0 0.0
    %176 = vmatprep.subr.mxu0 0.0
    %177 = vmatpush1.msra.mxu0 0.0
    %178 = vmatprep.subr.mxu0 0.0
    %179 = vmatpush1.msra.mxu0 0.0
    %180 = vmatprep.subr.mxu0 0.0
    %181 = vmatpush1.msra.mxu0 0.0
    %182 = vmatprep.subr.mxu0 0.0
    %183 = vmatpush1.msra.mxu0 0.0
    %184 = vmatprep.subr.mxu0 0.0
    %185 = vmatpush1.msra.mxu0 0.0
    %186 = vmatprep.subr.mxu0 0.0
    %187 = vmatpush1.msra.mxu0 0.0
    %188 = vmatprep.subr.mxu0 0.0
    %189 = vmatpush1.msra.mxu0 0.0
    %190 = vmatprep.subr.mxu0 0.0
    %191 = vmatpush1.msra.mxu0 0.0
    %192 = vmatprep.subr.mxu0 0.0
    %193 = vmatpush1.msra.mxu0 0.0
    %194 = vmatprep.mubr.f32.mxu0 0.0
    %195 = vmatmul.mubr.f32.gmra.mrb[0].mxu0 %v128
    %v196 = vpop.f32.mrb[0].mxu0
    %v197 = vadd.f32 %v124, %v196
    %v198 = vpop.f32.mrb[0].mxu0
    %199 = vdwg.mxu0
    %v200 = vld [vmem:[%s5] sm:$0xff]
    %v201 = vld [vmem:[%s5 + $0x8] sm:$0xff]
    %v202 = vld [vmem:[%s5 + $0x10] sm:$0xff]
    %v203 = vld [vmem:[%s5 + $0x18] sm:$0xff]
    %v204 = vld [vmem:[%s6] sm:$0x1]
    %v206 = vlaneseq
    %v207 = vshrl.u32 %v206, 7
    %v208 = vsub.s32 0, %v207
    %v209 = vrot.slane %v204, %v208
    %211 = vmatprep.subr.mxu0 0.0
    %212 = vmatpush1.msra.mxu0 %v200
    %213 = vmatprep.subr.mxu0 0.0
    %214 = vmatpush1.msra.mxu0 %v201
    %215 = vmatprep.subr.mxu0 0.0
    %216 = vmatpush1.msra.mxu0 %v202
    %217 = vmatprep.subr.mxu0 0.0
    %218 = vmatpush1.msra.mxu0 %v203
    %219 = vmatprep.subr.mxu0 0.0
    %220 = vmatpush1.msra.mxu0 0.0
    %221 = vmatprep.subr.mxu0 0.0
    %222 = vmatpush1.msra.mxu0 0.0
    %223 = vmatprep.subr.mxu0 0.0
    %224 = vmatpush1.msra.mxu0 0.0
    %225 = vmatprep.subr.mxu0 0.0
    %226 = vmatpush1.msra.mxu0 0.0
    %227 = vmatprep.subr.mxu0 0.0
    %228 = vmatpush1.msra.mxu0 0.0
    %229 = vmatprep.subr.mxu0 0.0
    %230 = vmatpush1.msra.mxu0 0.0
    %231 = vmatprep.subr.mxu0 0.0
    %232 = vmatpush1.msra.mxu0 0.0
    %233 = vmatprep.subr.mxu0 0.0
    %234 = vmatpush1.msra.mxu0 0.0
    %235 = vmatprep.subr.mxu0 0.0
    %236 = vmatpush1.msra.mxu0 0.0
    %237 = vmatprep.subr.mxu0 0.0
    %238 = vmatpush1.msra.mxu0 0.0
    %239 = vmatprep.subr.mxu0 0.0
    %240 = vmatpush1.msra.mxu0 0.0
    %241 = vmatprep.subr.mxu0 0.0
    %242 = vmatpush1.msra.mxu0 0.0
    %243 = vmatprep.subr.mxu0 0.0
    %244 = vmatpush1.msra.mxu0 0.0
    %245 = vmatprep.subr.mxu0 0.0
    %246 = vmatpush1.msra.mxu0 0.0
    %247 = vmatprep.subr.mxu0 0.0
    %248 = vmatpush1.msra.mxu0 0.0
    %249 = vmatprep.subr.mxu0 0.0
    %250 = vmatpush1.msra.mxu0 0.0
    %251 = vmatprep.subr.mxu0 0.0
    %252 = vmatpush1.msra.mxu0 0.0
    %253 = vmatprep.subr.mxu0 0.0
    %254 = vmatpush1.msra.mxu0 0.0
    %255 = vmatprep.subr.mxu0 0.0
    %256 = vmatpush1.msra.mxu0 0.0
    %257 = vmatprep.subr.mxu0 0.0
    %258 = vmatpush1.msra.mxu0 0.0
    %259 = vmatprep.subr.mxu0 0.0
    %260 = vmatpush1.msra.mxu0 0.0
    %261 = vmatprep.subr.mxu0 0.0
    %262 = vmatpush1.msra.mxu0 0.0
    %263 = vmatprep.subr.mxu0 0.0
    %264 = vmatpush1.msra.mxu0 0.0
    %265 = vmatprep.subr.mxu0 0.0
    %266 = vmatpush1.msra.mxu0 0.0
    %267 = vmatprep.subr.mxu0 0.0
    %268 = vmatpush1.msra.mxu0 0.0
    %269 = vmatprep.subr.mxu0 0.0
    %270 = vmatpush1.msra.mxu0 0.0
    %271 = vmatprep.subr.mxu0 0.0
    %272 = vmatpush1.msra.mxu0 0.0
    %273 = vmatprep.subr.mxu0 0.0
    %274 = vmatpush1.msra.mxu0 0.0
    %275 = vmatprep.mubr.f32.mxu0 0.0
    %276 = vmatmul.mubr.f32.gmra.mrb[0].mxu0 %v128
    %v277 = vpop.f32.mrb[0].mxu0
    %v278 = vadd.f32 %v209, %v277
    %v279 = vpop.f32.mrb[0].mxu0
    %280 = vdwg.mxu0
    %v281 = vmul.f32 %v197, %v197
    %v282 = vmul.f32 %v278, %v278
    %v283 = vadd.f32 %v281, %v282
    %vm284 = vcmask 58368
    %v285 = vsel %vm284, %v283, 0.0
    %286 = vadd.xlane.f32.xlu0 %v285
    %v287 = vpop.xlane.xlu0 %286
    %v288 = vmax.f32 %v287, 1e-24
    %v289 = vrsqrt.pop %v288
    %v290 = vmul.f32 %v197, %v289
    %291 = vst.msk [vmem:[#allocation2] sm:$0x3] %vm284, %v290
    %v292 = vmul.f32 %v278, %v289
    %293 = vst.msk [vmem:[#allocation4] sm:$0x3] %vm284, %v292
    // Predicated region
    $region30: #{tpu_custom_call.1} parent=1 // pred_check
      _
    $region31: #{tpu_custom_call.1} parent=1 // pred_check_branch
      %295 = sbr.rel (0) target = $region33
    $region32: #{tpu_custom_call.1} parent=1 // pred_region
      %s297 = ssub.s32 32, 32
      %298 = vsyncadd [#allocation3], %s297
      %s300 = sshll.u32 [#allocation2], 4
      %s301 = int_to_ptr.vmem [resolvable:$true] %s300
      %303 = dma.vmem_to_hbm [thread:$0]  %s301, 32, %s7, [#allocation3]
    $region33: #{tpu_custom_call.1} parent=1 // pred_fallthru
      _
    // Predicated region
    $region34: #{tpu_custom_call.1} parent=1 // pred_check
      _
    $region35: #{tpu_custom_call.1} parent=1 // pred_check_branch
      %305 = sbr.rel (0) target = $region37
    $region36: #{tpu_custom_call.1} parent=1 // pred_region
      %s307 = ssub.s32 32, 32
      %308 = vsyncadd [#allocation5], %s307
      %s310 = sshll.u32 [#allocation4], 4
      %s311 = int_to_ptr.vmem [resolvable:$true] %s310
      %313 = dma.vmem_to_hbm [thread:$0]  %s311, 32, %s8, [#allocation5]
    $region37: #{tpu_custom_call.1} parent=1 // pred_fallthru
      _
    // Predicated region
    $region38: #{tpu_custom_call.1} parent=1 // pred_check
      _
    $region39: #{tpu_custom_call.1} parent=1 // pred_check_branch
      %315 = sbr.rel (0) target = $region41
    $region40: #{tpu_custom_call.1} parent=1 // pred_region
      %316 = dma.done [#allocation3], 32
    $region41: #{tpu_custom_call.1} parent=1 // pred_fallthru
      _
    // Predicated region
    $region42: #{tpu_custom_call.1} parent=1 // pred_check
      _
    $region43: #{tpu_custom_call.1} parent=1 // pred_check_branch
      %318 = sbr.rel (0) target = $region45
    $region44: #{tpu_custom_call.1} parent=1 // pred_region
      %319 = dma.done [#allocation5], 32
    $region45: #{tpu_custom_call.1} parent=1 // pred_fallthru
      _
    %320 = vsyncpa [#allocation3], 1
    %321 = vsyncpa [#allocation5], 1

</llo_original>
